<compile_context>
chip_gen: v7x
topology: tpu7x:2x2x1
jax: 0.10.0
libtpu: 0.0.40
codegen_flags: <defaults>
</compile_context>

<pallas_src>
import functools

import jax
import jax.numpy as jnp
from jax.experimental import pallas as pl
from jax.experimental.pallas import tpu as pltpu

EPS = 1e-5  # torch.nn.LayerNorm default eps


def _decompose_kernel(*refs, TL, D, Dp, G, K, PAD, HALO, NT):
    if NT == 1:
        (xc_ref, w_ref, bconv_ref, gamma_ref, beta_ref,
         trend_ref, seas_ref, win_ref) = refs
        xl_ref = xr_ref = None
    else:
        (xc_ref, xl_ref, xr_ref, w_ref, bconv_ref, gamma_ref, beta_ref,
         trend_ref, seas_ref, win_ref) = refs

    t = pl.program_id(1)

    # ---- assemble the conv window in the f32 VMEM scratch (cast once) ------
    #   win[0        : HALO       ]  left halo
    #   win[HALO     : HALO+TL    ]  centre tile (always overwritten)
    #   win[HALO+TL  : HALO+TL+HALO] right halo
    win_ref[pl.ds(HALO, TL), :] = xc_ref[0].astype(jnp.float32)

    zeros_halo = jnp.zeros((HALO, Dp), dtype=jnp.float32)
    if NT == 1:
        # Single tile: both halos are exactly the conv's zero padding.  Only
        # the 2*HALO halo rows are zeroed, every step (cheap, and stays
        # correct if the batch axis is sharded across TensorCores).
        win_ref[pl.ds(0, HALO), :] = zeros_halo
        win_ref[pl.ds(HALO + TL, HALO), :] = zeros_halo
    else:
        @pl.when(t == 0)
        def _():
            win_ref[pl.ds(0, HALO), :] = zeros_halo

        @pl.when(t > 0)
        def _():
            win_ref[pl.ds(0, HALO), :] = xl_ref[0].astype(jnp.float32)

        @pl.when(t == NT - 1)
        def _():
            win_ref[pl.ds(HALO + TL, HALO), :] = zeros_halo

        @pl.when(t < NT - 1)
        def _():
            win_ref[pl.ds(HALO + TL, HALO), :] = xr_ref[0].astype(jnp.float32)

    # ---- depthwise conv (per-channel filters), all-f32 ----------------------
    # trend[l, d] = sum_k win[HALO - PAD + k + l, d] * w[k, d] + b[d]
    # Tap offsets are static Python ints -> fully unrolled; weight loaded once.
    w_f = w_ref[...]                       # (K, Dp), already f32
    base = HALO - PAD
    trend = win_ref[pl.ds(base, TL), :] * w_f[0:1, :]
    for k in range(1, K):
        trend = trend + win_ref[pl.ds(base + k, TL), :] * w_f[k:k + 1, :]
    trend = trend + bconv_ref[...]         # (1, Dp) broadcasts over TL

    trend_ref[0] = trend.astype(trend_ref.dtype)

    # ---- seasonal = LayerNorm over each D-wide channel group ----------------
    x_c = win_ref[pl.ds(HALO, TL), :]
    seasonal = x_c - trend
    gamma = gamma_ref[...]
    beta = beta_ref[...]

    if G == 1:
        mean = jnp.mean(seasonal, axis=-1, keepdims=True)
        ex2 = jnp.mean(seasonal * seasonal, axis=-1, keepdims=True)
        var = jnp.maximum(ex2 - mean * mean, 0.0)
        inv = jax.lax.rsqrt(var + EPS)
        seas_ref[0] = ((seasonal - mean) * inv * gamma + beta
                       ).astype(seas_ref.dtype)
    else:
        # Lane-packed path: each contiguous D-lane group is an independent
        # batch row; LayerNorm reduces within its own group only.
        for gi in range(G):
            lo = gi * D
            sl = seasonal[:, lo:lo + D]
            mean = jnp.mean(sl, axis=-1, keepdims=True)
            ex2 = jnp.mean(sl * sl, axis=-1, keepdims=True)
            var = jnp.maximum(ex2 - mean * mean, 0.0)
            inv = jax.lax.rsqrt(var + EPS)
            seas_ref[0, :, pl.ds(lo, D)] = (
                (sl - mean) * inv * gamma[:, lo:lo + D] + beta[:, lo:lo + D]
            ).astype(seas_ref.dtype)


def _vmem_capacity_bytes():
    try:
        info = pltpu.get_tpu_info()
        for name in ("vmem_capacity_bytes", "vmem_size_bytes", "vmem_bytes"):
            v = getattr(info, name, None)
            if v:
                return int(v)
    except Exception:
        pass
    return 64 * 2**20      # conservative fallback (v7x physical VMEM)


def trend_seasonal_decompose(x, conv_w, conv_b, gamma, beta, *,
                             kernel_size, max_tile_l=None, pack_lanes=True):
    """x: [B, L, D]. conv_w: [K, D] (= torch weight[:,0,:].T). conv_b/gamma/beta: [D]."""
    if kernel_size % 2 != 1:
        raise ValueError(
            "TrendSeasonalDecomposer requires an odd kernel_size: PyTorch "
            "Conv1d with padding=K//2 only preserves L for odd K.")
    B, L, D = x.shape
    K = kernel_size
    PAD = K // 2
    HALO = max(8, ((PAD + 7) // 8) * 8)      # halo rows, multiple of 8 >= PAD

    # ---- lane packing: fold G batch rows into the lane dim when D < 128 ----
    G = 1
    if pack_lanes and D < 128:
        gmax = min(128 // D, B)
        for g in range(gmax, 0, -1):
            if B % g == 0:
                G = g
                break
    Dp = G * D
    Bg = B // G

    esz = x.dtype.itemsize

    # ---- sequence tile length from a generation-aware VMEM budget ----------
    cap = _vmem_capacity_bytes()
    budget = max(4 * 2**20, int(0.40 * cap))
    const_bytes = 4 * HALO * Dp * esz + 2 * (K + 3) * Dp * 4
    # centre tile (2 bufs) + 2 outputs (2 bufs each) + f32 scratch + f32 temps
    per_row = Dp * (2 * esz + 4 * esz + 4 + 32)
    tl_cap = max(HALO, (budget - const_bytes) // per_row)
    l_ceil = ((L + HALO - 1) // HALO) * HALO
    TL = min(tl_cap, l_ceil)
    if max_tile_l is not None:
        TL = min(TL, max(HALO, max_tile_l))
    TL = max(HALO, (TL // HALO) * HALO)
    Lp = ((L + TL - 1) // TL) * TL           # pad L (exact: conv pad is zero)
    NT = Lp // TL

    # ---- wrapper-side layout: pad ragged L, pack batch rows into lanes -----
    x_p = x
    if Lp > L:
        x_p = jnp.pad(x_p, ((0, 0), (0, Lp - L), (0, 0)))
    if G > 1:
        x_p = x_p.reshape(Bg, G, Lp, D).transpose(0, 2, 1, 3).reshape(Bg, Lp, Dp)

    w32 = conv_w.astype(jnp.float32)
    b32 = conv_b.astype(jnp.float32).reshape(1, D)
    g32 = gamma.astype(jnp.float32).reshape(1, D)
    be32 = beta.astype(jnp.float32).reshape(1, D)
    if G > 1:
        w32 = jnp.tile(w32, (1, G))
        b32 = jnp.tile(b32, (1, G))
        g32 = jnp.tile(g32, (1, G))
        be32 = jnp.tile(be32, (1, G))

    kernel = functools.partial(_decompose_kernel, TL=TL, D=D, Dp=Dp, G=G,
                               K=K, PAD=PAD, HALO=HALO, NT=NT)

    center_spec = pl.BlockSpec((1, TL, Dp), lambda b, t: (b, t, 0))
    param_specs = [
        pl.BlockSpec((K, Dp), lambda b, t: (0, 0)),   # conv weight (f32)
        pl.BlockSpec((1, Dp), lambda b, t: (0, 0)),   # conv bias
        pl.BlockSpec((1, Dp), lambda b, t: (0, 0)),   # LN gamma
        pl.BlockSpec((1, Dp), lambda b, t: (0, 0)),   # LN beta
    ]
    if NT == 1:
        in_specs = [center_spec] + param_specs
        inputs = (x_p, w32, b32, g32, be32)
    else:
        R = TL // HALO        # halo-sized blocks per tile (exact)
        NBH = Lp // HALO      # halo-sized blocks along padded L (exact)
        left_spec = pl.BlockSpec(
            (1, HALO, Dp), lambda b, t: (b, jnp.maximum(t * R - 1, 0), 0))
        right_spec = pl.BlockSpec(
            (1, HALO, Dp), lambda b, t: (b, jnp.minimum((t + 1) * R, NBH - 1), 0))
        in_specs = [center_spec, left_spec, right_spec] + param_specs
        inputs = (x_p, x_p, x_p, w32, b32, g32, be32)

    footprint = const_bytes + per_row * TL
    vmem_limit = int(min(int(0.9 * cap), max(64 * 2**20, 2 * footprint)))

    cost = pl.CostEstimate(
        flops=B * Lp * D * (2 * K + 10),
        transcendentals=B * Lp,
        bytes_accessed=3 * B * Lp * D * esz + (K + 3) * Dp * 4,
    )

    trend_p, seas_p = pl.pallas_call(
        kernel,
        out_shape=(
            jax.ShapeDtypeStruct((Bg, Lp, Dp), x.dtype),
            jax.ShapeDtypeStruct((Bg, Lp, Dp), x.dtype),
        ),
        grid_spec=pltpu.PrefetchScalarGridSpec(
            num_scalar_prefetch=0,
            grid=(Bg, NT),
            in_specs=in_specs,
            out_specs=[
                pl.BlockSpec((1, TL, Dp), lambda b, t: (b, t, 0)),
                pl.BlockSpec((1, TL, Dp), lambda b, t: (b, t, 0)),
            ],
            scratch_shapes=[pltpu.VMEM((TL + 2 * HALO, Dp), jnp.float32)],
        ),
        compiler_params=pltpu.CompilerParams(
            dimension_semantics=("parallel", "parallel"),
            vmem_limit_bytes=vmem_limit),
        cost_estimate=cost,
    )(*inputs)

    def _unpack(y):
        if G > 1:
            y = y.reshape(Bg, Lp, G, D).transpose(0, 2, 1, 3).reshape(B, Lp, D)
        if Lp > L:
            y = y[:, :L, :]
        return y

    return _unpack(trend_p), _unpack(seas_p)


def _reference(x, conv_w, conv_b, gamma, beta, kernel_size):
    # Pure-jnp reference (same math as the PyTorch module) for sanity checks.
    B, L, D = x.shape
    K = kernel_size
    PAD = K // 2
    xp = jnp.pad(x.astype(jnp.float32), ((0, 0), (PAD, PAD), (0, 0)))
    trend = jnp.zeros((B, L, D), jnp.float32)
    for k in range(K):
        trend = trend + xp[:, k:k + L, :] * conv_w[k][None, None, :]
    trend = trend + conv_b[None, None, :]
    seasonal = x.astype(jnp.float32) - trend
    mean = seasonal.mean(-1, keepdims=True)
    var = ((seasonal - mean) ** 2).mean(-1, keepdims=True)
    seasonal = (seasonal - mean) * jax.lax.rsqrt(var + EPS) * gamma + beta
    return trend.astype(x.dtype), seasonal.astype(x.dtype)


if __name__ == "__main__":
    def _check(B, L, D, kernel_size, max_tile_l, pack_lanes=True):
        key = jax.random.PRNGKey(0)
        kx, kw, kb, kg, kbe = jax.random.split(key, 5)
        x = jax.random.normal(kx, (B, L, D), dtype=jnp.float32)
        # Shapes match nn.Conv1d(D, D, K, groups=D): weight [D,1,K] stored here
        # as [K, D]; bias [D]; LayerNorm(D) gamma/beta.
        conv_w = (jax.random.normal(kw, (kernel_size, D), dtype=jnp.float32)
                  * (1.0 / kernel_size))
        conv_b = jax.random.normal(kb, (D,), dtype=jnp.float32) * 0.01
        gamma = 1.0 + 0.1 * jax.random.normal(kg, (D,), dtype=jnp.float32)
        beta = 0.1 * jax.random.normal(kbe, (D,), dtype=jnp.float32)

        trend, seasonal = trend_seasonal_decompose(
            x, conv_w, conv_b, gamma, beta,
            kernel_size=kernel_size, max_tile_l=max_tile_l,
            pack_lanes=pack_lanes)
        jax.block_until_ready((trend, seasonal))

        t_ref, s_ref = _reference(x, conv_w, conv_b, gamma, beta, kernel_size)
        assert trend.shape == t_ref.shape and seasonal.shape == s_ref.shape
        assert jnp.allclose(trend, t_ref, atol=1e-4, rtol=1e-4)
        assert jnp.allclose(seasonal, s_ref, atol=1e-4, rtol=1e-4)

    # Single-tile path (module-default shapes, NT = 1), lane-packed (G=2).
    _check(B=2, L=16, D=32, kernel_size=25, max_tile_l=None)
    # Tiled path: TL=16, 5 sequence tiles, halos + lane packing exercised.
    _check(B=2, L=80, D=32, kernel_size=25, max_tile_l=16)
    # Ragged L: L=50 padded to 64, last tile partially padded.
    _check(B=2, L=50, D=32, kernel_size=25, max_tile_l=16)
    # Unpacked path (G=1), tiled with halos.
    _check(B=2, L=80, D=32, kernel_size=25, max_tile_l=16, pack_lanes=False)

    print("KERNEL_OK")
</pallas_src>

<mosaic_0001>
module attributes {stable_mosaic.version = 11 : i64} {
  func.func @_decompose_kernel(%arg0: i32, %arg1: i32, %arg2: memref<1x16x64xf32, #tpu.memory_space<vmem>>, %arg3: memref<25x64xf32, #tpu.memory_space<vmem>>, %arg4: memref<1x64xf32, #tpu.memory_space<vmem>>, %arg5: memref<1x64xf32, #tpu.memory_space<vmem>>, %arg6: memref<1x64xf32, #tpu.memory_space<vmem>>, %arg7: memref<1x16x64xf32, #tpu.memory_space<vmem>>, %arg8: memref<1x16x64xf32, #tpu.memory_space<vmem>>, %arg9: memref<48x64xf32, #tpu.memory_space<vmem>>) attributes {dimension_semantics = [#tpu.dimension_semantics<parallel>, #tpu.dimension_semantics<parallel>], iteration_bounds = array<i64: 1, 1>, scalar_prefetch = 0 : i64, scratch_operands = 1 : i64, tpu.core_type = #tpu.core_type<tc>, window_params = [{transform_indices = @transform_0, window_bounds = array<i64: 1, 16, 64>}, {pipeline_mode = #tpu.pipeline_mode<synchronous>, transform_indices = @transform_1, window_bounds = array<i64: 25, 64>}, {pipeline_mode = #tpu.pipeline_mode<synchronous>, transform_indices = @transform_2, window_bounds = array<i64: 1, 64>}, {pipeline_mode = #tpu.pipeline_mode<synchronous>, transform_indices = @transform_3, window_bounds = array<i64: 1, 64>}, {pipeline_mode = #tpu.pipeline_mode<synchronous>, transform_indices = @transform_4, window_bounds = array<i64: 1, 64>}, {transform_indices = @transform_5, window_bounds = array<i64: 1, 16, 64>}, {transform_indices = @transform_6, window_bounds = array<i64: 1, 16, 64>}]} {
    %c0 = arith.constant 0 : index
    %c0_0 = arith.constant 0 : index
    %c0_1 = arith.constant 0 : index
    %0 = vector.load %arg2[%c0, %c0_0, %c0_1] : memref<1x16x64xf32, #tpu.memory_space<vmem>>, vector<1x16x64xf32>
    %1 = vector.shape_cast %0 : vector<1x16x64xf32> to vector<16x64xf32>
    %c16 = arith.constant 16 : index
    %c0_2 = arith.constant 0 : index
    %2 = vector.load %arg9[%c16, %c0_2] : memref<48x64xf32, #tpu.memory_space<vmem>>, vector<16x64xf32>
    tpu.vector_store %arg9[%c16, %c0_2], %1 {strides = array<i32>} : memref<48x64xf32, #tpu.memory_space<vmem>>, vector<16x64xf32>,
    %cst = arith.constant 0.000000e+00 : f32
    %3 = vector.broadcast %cst : f32 to vector<16x64xf32>
    %c0_3 = arith.constant 0 : index
    %c0_4 = arith.constant 0 : index
    %4 = vector.load %arg9[%c0_3, %c0_4] : memref<48x64xf32, #tpu.memory_space<vmem>>, vector<16x64xf32>
    tpu.vector_store %arg9[%c0_3, %c0_4], %3 {strides = array<i32>} : memref<48x64xf32, #tpu.memory_space<vmem>>, vector<16x64xf32>,
    %c32 = arith.constant 32 : index
    %c0_5 = arith.constant 0 : index
    %5 = vector.load %arg9[%c32, %c0_5] : memref<48x64xf32, #tpu.memory_space<vmem>>, vector<16x64xf32>
    tpu.vector_store %arg9[%c32, %c0_5], %3 {strides = array<i32>} : memref<48x64xf32, #tpu.memory_space<vmem>>, vector<16x64xf32>,
    %c0_6 = arith.constant 0 : index
    %c0_7 = arith.constant 0 : index
    %6 = vector.load %arg3[%c0_6, %c0_7] : memref<25x64xf32, #tpu.memory_space<vmem>>, vector<25x64xf32>
    %c4 = arith.constant 4 : index
    %c0_8 = arith.constant 0 : index
    %7 = vector.load %arg9[%c4, %c0_8] : memref<48x64xf32, #tpu.memory_space<vmem>>, vector<16x64xf32>
    %8 = vector.extract_strided_slice %6 {offsets = [0, 0], sizes = [1, 64], strides = [1, 1]} : vector<25x64xf32> to vector<1x64xf32>
    %9 = vector.broadcast %8 : vector<1x64xf32> to vector<16x64xf32>
    %10 = arith.mulf %7, %9 : vector<16x64xf32>
    %c5 = arith.constant 5 : index
    %c0_9 = arith.constant 0 : index
    %11 = vector.load %arg9[%c5, %c0_9] : memref<48x64xf32, #tpu.memory_space<vmem>>, vector<16x64xf32>
    %12 = vector.extract_strided_slice %6 {offsets = [1, 0], sizes = [1, 64], strides = [1, 1]} : vector<25x64xf32> to vector<1x64xf32>
    %13 = vector.broadcast %12 : vector<1x64xf32> to vector<16x64xf32>
    %14 = arith.mulf %11, %13 : vector<16x64xf32>
    %15 = arith.addf %10, %14 : vector<16x64xf32>
    %c6 = arith.constant 6 : index
    %c0_10 = arith.constant 0 : index
    %16 = vector.load %arg9[%c6, %c0_10] : memref<48x64xf32, #tpu.memory_space<vmem>>, vector<16x64xf32>
    %17 = vector.extract_strided_slice %6 {offsets = [2, 0], sizes = [1, 64], strides = [1, 1]} : vector<25x64xf32> to vector<1x64xf32>
    %18 = vector.broadcast %17 : vector<1x64xf32> to vector<16x64xf32>
    %19 = arith.mulf %16, %18 : vector<16x64xf32>
    %20 = arith.addf %15, %19 : vector<16x64xf32>
    %c7 = arith.constant 7 : index
    %c0_11 = arith.constant 0 : index
    %21 = vector.load %arg9[%c7, %c0_11] : memref<48x64xf32, #tpu.memory_space<vmem>>, vector<16x64xf32>
    %22 = vector.extract_strided_slice %6 {offsets = [3, 0], sizes = [1, 64], strides = [1, 1]} : vector<25x64xf32> to vector<1x64xf32>
    %23 = vector.broadcast %22 : vector<1x64xf32> to vector<16x64xf32>
    %24 = arith.mulf %21, %23 : vector<16x64xf32>
    %25 = arith.addf %20, %24 : vector<16x64xf32>
    %c8 = arith.constant 8 : index
    %c0_12 = arith.constant 0 : index
    %26 = vector.load %arg9[%c8, %c0_12] : memref<48x64xf32, #tpu.memory_space<vmem>>, vector<16x64xf32>
    %27 = vector.extract_strided_slice %6 {offsets = [4, 0], sizes = [1, 64], strides = [1, 1]} : vector<25x64xf32> to vector<1x64xf32>
    %28 = vector.broadcast %27 : vector<1x64xf32> to vector<16x64xf32>
    %29 = arith.mulf %26, %28 : vector<16x64xf32>
    %30 = arith.addf %25, %29 : vector<16x64xf32>
    %c9 = arith.constant 9 : index
    %c0_13 = arith.constant 0 : index
    %31 = vector.load %arg9[%c9, %c0_13] : memref<48x64xf32, #tpu.memory_space<vmem>>, vector<16x64xf32>
    %32 = vector.extract_strided_slice %6 {offsets = [5, 0], sizes = [1, 64], strides = [1, 1]} : vector<25x64xf32> to vector<1x64xf32>
    %33 = vector.broadcast %32 : vector<1x64xf32> to vector<16x64xf32>
    %34 = arith.mulf %31, %33 : vector<16x64xf32>
    %35 = arith.addf %30, %34 : vector<16x64xf32>
    %c10 = arith.constant 10 : index
    %c0_14 = arith.constant 0 : index
    %36 = vector.load %arg9[%c10, %c0_14] : memref<48x64xf32, #tpu.memory_space<vmem>>, vector<16x64xf32>
    %37 = vector.extract_strided_slice %6 {offsets = [6, 0], sizes = [1, 64], strides = [1, 1]} : vector<25x64xf32> to vector<1x64xf32>
    %38 = vector.broadcast %37 : vector<1x64xf32> to vector<16x64xf32>
    %39 = arith.mulf %36, %38 : vector<16x64xf32>
    %40 = arith.addf %35, %39 : vector<16x64xf32>
    %c11 = arith.constant 11 : index
    %c0_15 = arith.constant 0 : index
    %41 = vector.load %arg9[%c11, %c0_15] : memref<48x64xf32, #tpu.memory_space<vmem>>, vector<16x64xf32>
    %42 = vector.extract_strided_slice %6 {offsets = [7, 0], sizes = [1, 64], strides = [1, 1]} : vector<25x64xf32> to vector<1x64xf32>
    %43 = vector.broadcast %42 : vector<1x64xf32> to vector<16x64xf32>
    %44 = arith.mulf %41, %43 : vector<16x64xf32>
    %45 = arith.addf %40, %44 : vector<16x64xf32>
    %c12 = arith.constant 12 : index
    %c0_16 = arith.constant 0 : index
    %46 = vector.load %arg9[%c12, %c0_16] : memref<48x64xf32, #tpu.memory_space<vmem>>, vector<16x64xf32>
    %47 = vector.extract_strided_slice %6 {offsets = [8, 0], sizes = [1, 64], strides = [1, 1]} : vector<25x64xf32> to vector<1x64xf32>
    %48 = vector.broadcast %47 : vector<1x64xf32> to vector<16x64xf32>
    %49 = arith.mulf %46, %48 : vector<16x64xf32>
    %50 = arith.addf %45, %49 : vector<16x64xf32>
    %c13 = arith.constant 13 : index
    %c0_17 = arith.constant 0 : index
    %51 = vector.load %arg9[%c13, %c0_17] : memref<48x64xf32, #tpu.memory_space<vmem>>, vector<16x64xf32>
    %52 = vector.extract_strided_slice %6 {offsets = [9, 0], sizes = [1, 64], strides = [1, 1]} : vector<25x64xf32> to vector<1x64xf32>
    %53 = vector.broadcast %52 : vector<1x64xf32> to vector<16x64xf32>
    %54 = arith.mulf %51, %53 : vector<16x64xf32>
    %55 = arith.addf %50, %54 : vector<16x64xf32>
    %c14 = arith.constant 14 : index
    %c0_18 = arith.constant 0 : index
    %56 = vector.load %arg9[%c14, %c0_18] : memref<48x64xf32, #tpu.memory_space<vmem>>, vector<16x64xf32>
    %57 = vector.extract_strided_slice %6 {offsets = [10, 0], sizes = [1, 64], strides = [1, 1]} : vector<25x64xf32> to vector<1x64xf32>
    %58 = vector.broadcast %57 : vector<1x64xf32> to vector<16x64xf32>
    %59 = arith.mulf %56, %58 : vector<16x64xf32>
    %60 = arith.addf %55, %59 : vector<16x64xf32>
    %c15 = arith.constant 15 : index
    %c0_19 = arith.constant 0 : index
    %61 = vector.load %arg9[%c15, %c0_19] : memref<48x64xf32, #tpu.memory_space<vmem>>, vector<16x64xf32>
    %62 = vector.extract_strided_slice %6 {offsets = [11, 0], sizes = [1, 64], strides = [1, 1]} : vector<25x64xf32> to vector<1x64xf32>
    %63 = vector.broadcast %62 : vector<1x64xf32> to vector<16x64xf32>
    %64 = arith.mulf %61, %63 : vector<16x64xf32>
    %65 = arith.addf %60, %64 : vector<16x64xf32>
    %c16_20 = arith.constant 16 : index
    %c0_21 = arith.constant 0 : index
    %66 = vector.load %arg9[%c16_20, %c0_21] : memref<48x64xf32, #tpu.memory_space<vmem>>, vector<16x64xf32>
    %67 = vector.extract_strided_slice %6 {offsets = [12, 0], sizes = [1, 64], strides = [1, 1]} : vector<25x64xf32> to vector<1x64xf32>
    %68 = vector.broadcast %67 : vector<1x64xf32> to vector<16x64xf32>
    %69 = arith.mulf %66, %68 : vector<16x64xf32>
    %70 = arith.addf %65, %69 : vector<16x64xf32>
    %c17 = arith.constant 17 : index
    %c0_22 = arith.constant 0 : index
    %71 = vector.load %arg9[%c17, %c0_22] : memref<48x64xf32, #tpu.memory_space<vmem>>, vector<16x64xf32>
    %72 = vector.extract_strided_slice %6 {offsets = [13, 0], sizes = [1, 64], strides = [1, 1]} : vector<25x64xf32> to vector<1x64xf32>
    %73 = vector.broadcast %72 : vector<1x64xf32> to vector<16x64xf32>
    %74 = arith.mulf %71, %73 : vector<16x64xf32>
    %75 = arith.addf %70, %74 : vector<16x64xf32>
    %c18 = arith.constant 18 : index
    %c0_23 = arith.constant 0 : index
    %76 = vector.load %arg9[%c18, %c0_23] : memref<48x64xf32, #tpu.memory_space<vmem>>, vector<16x64xf32>
    %77 = vector.extract_strided_slice %6 {offsets = [14, 0], sizes = [1, 64], strides = [1, 1]} : vector<25x64xf32> to vector<1x64xf32>
    %78 = vector.broadcast %77 : vector<1x64xf32> to vector<16x64xf32>
    %79 = arith.mulf %76, %78 : vector<16x64xf32>
    %80 = arith.addf %75, %79 : vector<16x64xf32>
    %c19 = arith.constant 19 : index
    %c0_24 = arith.constant 0 : index
    %81 = vector.load %arg9[%c19, %c0_24] : memref<48x64xf32, #tpu.memory_space<vmem>>, vector<16x64xf32>
    %82 = vector.extract_strided_slice %6 {offsets = [15, 0], sizes = [1, 64], strides = [1, 1]} : vector<25x64xf32> to vector<1x64xf32>
    %83 = vector.broadcast %82 : vector<1x64xf32> to vector<16x64xf32>
    %84 = arith.mulf %81, %83 : vector<16x64xf32>
    %85 = arith.addf %80, %84 : vector<16x64xf32>
    %c20 = arith.constant 20 : index
    %c0_25 = arith.constant 0 : index
    %86 = vector.load %arg9[%c20, %c0_25] : memref<48x64xf32, #tpu.memory_space<vmem>>, vector<16x64xf32>
    %87 = vector.extract_strided_slice %6 {offsets = [16, 0], sizes = [1, 64], strides = [1, 1]} : vector<25x64xf32> to vector<1x64xf32>
    %88 = vector.broadcast %87 : vector<1x64xf32> to vector<16x64xf32>
    %89 = arith.mulf %86, %88 : vector<16x64xf32>
    %90 = arith.addf %85, %89 : vector<16x64xf32>
    %c21 = arith.constant 21 : index
    %c0_26 = arith.constant 0 : index
    %91 = vector.load %arg9[%c21, %c0_26] : memref<48x64xf32, #tpu.memory_space<vmem>>, vector<16x64xf32>
    %92 = vector.extract_strided_slice %6 {offsets = [17, 0], sizes = [1, 64], strides = [1, 1]} : vector<25x64xf32> to vector<1x64xf32>
    %93 = vector.broadcast %92 : vector<1x64xf32> to vector<16x64xf32>
    %94 = arith.mulf %91, %93 : vector<16x64xf32>
    %95 = arith.addf %90, %94 : vector<16x64xf32>
    %c22 = arith.constant 22 : index
    %c0_27 = arith.constant 0 : index
    %96 = vector.load %arg9[%c22, %c0_27] : memref<48x64xf32, #tpu.memory_space<vmem>>, vector<16x64xf32>
    %97 = vector.extract_strided_slice %6 {offsets = [18, 0], sizes = [1, 64], strides = [1, 1]} : vector<25x64xf32> to vector<1x64xf32>
    %98 = vector.broadcast %97 : vector<1x64xf32> to vector<16x64xf32>
    %99 = arith.mulf %96, %98 : vector<16x64xf32>
    %100 = arith.addf %95, %99 : vector<16x64xf32>
    %c23 = arith.constant 23 : index
    %c0_28 = arith.constant 0 : index
    %101 = vector.load %arg9[%c23, %c0_28] : memref<48x64xf32, #tpu.memory_space<vmem>>, vector<16x64xf32>
    %102 = vector.extract_strided_slice %6 {offsets = [19, 0], sizes = [1, 64], strides = [1, 1]} : vector<25x64xf32> to vector<1x64xf32>
    %103 = vector.broadcast %102 : vector<1x64xf32> to vector<16x64xf32>
    %104 = arith.mulf %101, %103 : vector<16x64xf32>
    %105 = arith.addf %100, %104 : vector<16x64xf32>
    %c24 = arith.constant 24 : index
    %c0_29 = arith.constant 0 : index
    %106 = vector.load %arg9[%c24, %c0_29] : memref<48x64xf32, #tpu.memory_space<vmem>>, vector<16x64xf32>
    %107 = vector.extract_strided_slice %6 {offsets = [20, 0], sizes = [1, 64], strides = [1, 1]} : vector<25x64xf32> to vector<1x64xf32>
    %108 = vector.broadcast %107 : vector<1x64xf32> to vector<16x64xf32>
    %109 = arith.mulf %106, %108 : vector<16x64xf32>
    %110 = arith.addf %105, %109 : vector<16x64xf32>
    %c25 = arith.constant 25 : index
    %c0_30 = arith.constant 0 : index
    %111 = vector.load %arg9[%c25, %c0_30] : memref<48x64xf32, #tpu.memory_space<vmem>>, vector<16x64xf32>
    %112 = vector.extract_strided_slice %6 {offsets = [21, 0], sizes = [1, 64], strides = [1, 1]} : vector<25x64xf32> to vector<1x64xf32>
    %113 = vector.broadcast %112 : vector<1x64xf32> to vector<16x64xf32>
    %114 = arith.mulf %111, %113 : vector<16x64xf32>
    %115 = arith.addf %110, %114 : vector<16x64xf32>
    %c26 = arith.constant 26 : index
    %c0_31 = arith.constant 0 : index
    %116 = vector.load %arg9[%c26, %c0_31] : memref<48x64xf32, #tpu.memory_space<vmem>>, vector<16x64xf32>
    %117 = vector.extract_strided_slice %6 {offsets = [22, 0], sizes = [1, 64], strides = [1, 1]} : vector<25x64xf32> to vector<1x64xf32>
    %118 = vector.broadcast %117 : vector<1x64xf32> to vector<16x64xf32>
    %119 = arith.mulf %116, %118 : vector<16x64xf32>
    %120 = arith.addf %115, %119 : vector<16x64xf32>
    %c27 = arith.constant 27 : index
    %c0_32 = arith.constant 0 : index
    %121 = vector.load %arg9[%c27, %c0_32] : memref<48x64xf32, #tpu.memory_space<vmem>>, vector<16x64xf32>
    %122 = vector.extract_strided_slice %6 {offsets = [23, 0], sizes = [1, 64], strides = [1, 1]} : vector<25x64xf32> to vector<1x64xf32>
    %123 = vector.broadcast %122 : vector<1x64xf32> to vector<16x64xf32>
    %124 = arith.mulf %121, %123 : vector<16x64xf32>
    %125 = arith.addf %120, %124 : vector<16x64xf32>
    %c28 = arith.constant 28 : index
    %c0_33 = arith.constant 0 : index
    %126 = vector.load %arg9[%c28, %c0_33] : memref<48x64xf32, #tpu.memory_space<vmem>>, vector<16x64xf32>
    %127 = vector.extract_strided_slice %6 {offsets = [24, 0], sizes = [1, 64], strides = [1, 1]} : vector<25x64xf32> to vector<1x64xf32>
    %128 = vector.broadcast %127 : vector<1x64xf32> to vector<16x64xf32>
    %129 = arith.mulf %126, %128 : vector<16x64xf32>
    %130 = arith.addf %125, %129 : vector<16x64xf32>
    %c0_34 = arith.constant 0 : index
    %c0_35 = arith.constant 0 : index
    %131 = vector.load %arg4[%c0_34, %c0_35] : memref<1x64xf32, #tpu.memory_space<vmem>>, vector<1x64xf32>
    %132 = vector.broadcast %131 : vector<1x64xf32> to vector<16x64xf32>
    %133 = arith.addf %130, %132 : vector<16x64xf32>
    %c0_36 = arith.constant 0 : index
    %c0_37 = arith.constant 0 : index
    %c0_38 = arith.constant 0 : index
    %134 = vector.load %arg7[%c0_36, %c0_37, %c0_38] : memref<1x16x64xf32, #tpu.memory_space<vmem>>, vector<1x16x64xf32>
    %135 = vector.shape_cast %134 : vector<1x16x64xf32> to vector<16x64xf32>
    %136 = vector.shape_cast %133 : vector<16x64xf32> to vector<1x16x64xf32>
    tpu.vector_store %arg7[%c0_36, %c0_37, %c0_38], %136 {strides = array<i32>} : memref<1x16x64xf32, #tpu.memory_space<vmem>>, vector<1x16x64xf32>,
    %c16_39 = arith.constant 16 : index
    %c0_40 = arith.constant 0 : index
    %137 = vector.load %arg9[%c16_39, %c0_40] : memref<48x64xf32, #tpu.memory_space<vmem>>, vector<16x64xf32>
    %138 = arith.subf %137, %133 : vector<16x64xf32>
    %c0_41 = arith.constant 0 : index
    %c0_42 = arith.constant 0 : index
    %139 = vector.load %arg5[%c0_41, %c0_42] : memref<1x64xf32, #tpu.memory_space<vmem>>, vector<1x64xf32>
    %c0_43 = arith.constant 0 : index
    %c0_44 = arith.constant 0 : index
    %140 = vector.load %arg6[%c0_43, %c0_44] : memref<1x64xf32, #tpu.memory_space<vmem>>, vector<1x64xf32>
    %141 = vector.extract_strided_slice %138 {offsets = [0, 0], sizes = [16, 32], strides = [1, 1]} : vector<16x64xf32> to vector<16x32xf32>
    %cst_45 = arith.constant dense<0.000000e+00> : vector<16xf32>
    %142 = vector.multi_reduction <add>, %141, %cst_45 [1] : vector<16x32xf32> to vector<16xf32>
    %143 = vector.shape_cast %142 : vector<16xf32> to vector<16x1xf32>
    %cst_46 = arith.constant 3.200000e+01 : f32
    %144 = vector.broadcast %cst_46 : f32 to vector<16x1xf32>
    %145 = arith.divf %143, %144 : vector<16x1xf32>
    %146 = arith.mulf %141, %141 : vector<16x32xf32>
    %cst_47 = arith.constant dense<0.000000e+00> : vector<16xf32>
    %147 = vector.multi_reduction <add>, %146, %cst_47 [1] : vector<16x32xf32> to vector<16xf32>
    %148 = vector.shape_cast %147 : vector<16xf32> to vector<16x1xf32>
    %cst_48 = arith.constant 3.200000e+01 : f32
    %149 = vector.broadcast %cst_48 : f32 to vector<16x1xf32>
    %150 = arith.divf %148, %149 : vector<16x1xf32>
    %151 = arith.mulf %145, %145 : vector<16x1xf32>
    %152 = arith.subf %150, %151 : vector<16x1xf32>
    %cst_49 = arith.constant 0.000000e+00 : f32
    %153 = vector.broadcast %cst_49 : f32 to vector<16x1xf32>
    %154 = arith.maximumf %152, %153 : vector<16x1xf32>
    %cst_50 = arith.constant 9.99999974E-6 : f32
    %155 = vector.broadcast %cst_50 : f32 to vector<16x1xf32>
    %156 = arith.addf %154, %155 : vector<16x1xf32>
    %157 = math.rsqrt %156 : vector<16x1xf32>
    %158 = vector.broadcast %145 : vector<16x1xf32> to vector<16x32xf32>
    %159 = arith.subf %141, %158 : vector<16x32xf32>
    %160 = vector.broadcast %157 : vector<16x1xf32> to vector<16x32xf32>
    %161 = arith.mulf %159, %160 : vector<16x32xf32>
    %162 = vector.extract_strided_slice %139 {offsets = [0, 0], sizes = [1, 32], strides = [1, 1]} : vector<1x64xf32> to vector<1x32xf32>
    %163 = vector.broadcast %162 : vector<1x32xf32> to vector<16x32xf32>
    %164 = arith.mulf %161, %163 : vector<16x32xf32>
    %165 = vector.extract_strided_slice %140 {offsets = [0, 0], sizes = [1, 32], strides = [1, 1]} : vector<1x64xf32> to vector<1x32xf32>
    %166 = vector.broadcast %165 : vector<1x32xf32> to vector<16x32xf32>
    %167 = arith.addf %164, %166 : vector<16x32xf32>
    %c0_51 = arith.constant 0 : index
    %c0_52 = arith.constant 0 : index
    %c0_53 = arith.constant 0 : index
    %168 = vector.load %arg8[%c0_51, %c0_52, %c0_53] : memref<1x16x64xf32, #tpu.memory_space<vmem>>, vector<1x16x32xf32>
    %169 = vector.shape_cast %168 : vector<1x16x32xf32> to vector<16x32xf32>
    %170 = vector.shape_cast %167 : vector<16x32xf32> to vector<1x16x32xf32>
    tpu.vector_store %arg8[%c0_51, %c0_52, %c0_53], %170 {strides = array<i32>} : memref<1x16x64xf32, #tpu.memory_space<vmem>>, vector<1x16x32xf32>,
    %171 = vector.extract_strided_slice %138 {offsets = [0, 32], sizes = [16, 32], strides = [1, 1]} : vector<16x64xf32> to vector<16x32xf32>
    %cst_54 = arith.constant dense<0.000000e+00> : vector<16xf32>
    %172 = vector.multi_reduction <add>, %171, %cst_54 [1] : vector<16x32xf32> to vector<16xf32>
    %173 = vector.shape_cast %172 : vector<16xf32> to vector<16x1xf32>
    %cst_55 = arith.constant 3.200000e+01 : f32
    %174 = vector.broadcast %cst_55 : f32 to vector<16x1xf32>
    %175 = arith.divf %173, %174 : vector<16x1xf32>
    %176 = arith.mulf %171, %171 : vector<16x32xf32>
    %cst_56 = arith.constant dense<0.000000e+00> : vector<16xf32>
    %177 = vector.multi_reduction <add>, %176, %cst_56 [1] : vector<16x32xf32> to vector<16xf32>
    %178 = vector.shape_cast %177 : vector<16xf32> to vector<16x1xf32>
    %cst_57 = arith.constant 3.200000e+01 : f32
    %179 = vector.broadcast %cst_57 : f32 to vector<16x1xf32>
    %180 = arith.divf %178, %179 : vector<16x1xf32>
    %181 = arith.mulf %175, %175 : vector<16x1xf32>
    %182 = arith.subf %180, %181 : vector<16x1xf32>
    %cst_58 = arith.constant 0.000000e+00 : f32
    %183 = vector.broadcast %cst_58 : f32 to vector<16x1xf32>
    %184 = arith.maximumf %182, %183 : vector<16x1xf32>
    %cst_59 = arith.constant 9.99999974E-6 : f32
    %185 = vector.broadcast %cst_59 : f32 to vector<16x1xf32>
    %186 = arith.addf %184, %185 : vector<16x1xf32>
    %187 = math.rsqrt %186 : vector<16x1xf32>
    %188 = vector.broadcast %175 : vector<16x1xf32> to vector<16x32xf32>
    %189 = arith.subf %171, %188 : vector<16x32xf32>
    %190 = vector.broadcast %187 : vector<16x1xf32> to vector<16x32xf32>
    %191 = arith.mulf %189, %190 : vector<16x32xf32>
    %192 = vector.extract_strided_slice %139 {offsets = [0, 32], sizes = [1, 32], strides = [1, 1]} : vector<1x64xf32> to vector<1x32xf32>
    %193 = vector.broadcast %192 : vector<1x32xf32> to vector<16x32xf32>
    %194 = arith.mulf %191, %193 : vector<16x32xf32>
    %195 = vector.extract_strided_slice %140 {offsets = [0, 32], sizes = [1, 32], strides = [1, 1]} : vector<1x64xf32> to vector<1x32xf32>
    %196 = vector.broadcast %195 : vector<1x32xf32> to vector<16x32xf32>
    %197 = arith.addf %194, %196 : vector<16x32xf32>
    %c0_60 = arith.constant 0 : index
    %c0_61 = arith.constant 0 : index
    %c32_62 = arith.constant 32 : index
    %198 = vector.load %arg8[%c0_60, %c0_61, %c32_62] : memref<1x16x64xf32, #tpu.memory_space<vmem>>, vector<1x16x32xf32>
    %199 = vector.shape_cast %198 : vector<1x16x32xf32> to vector<16x32xf32>
    %200 = vector.shape_cast %197 : vector<16x32xf32> to vector<1x16x32xf32>
    tpu.vector_store %arg8[%c0_60, %c0_61, %c32_62], %200 {strides = array<i32>} : memref<1x16x64xf32, #tpu.memory_space<vmem>>, vector<1x16x32xf32>,
    return
  }
  func.func @transform_0(%arg0: i32, %arg1: i32) -> (i32, i32, i32) {
    %c0_i32 = arith.constant 0 : i32
    %c0_i32_0 = arith.constant 0 : i32
    return %arg0, %arg1, %c0_i32 : i32, i32, i32
  }
  func.func @transform_1(%arg0: i32, %arg1: i32) -> (i32, i32) {
    %c0_i32 = arith.constant 0 : i32
    %c0_i32_0 = arith.constant 0 : i32
    %c0_i32_1 = arith.constant 0 : i32
    return %c0_i32, %c0_i32_0 : i32, i32
  }
  func.func @transform_2(%arg0: i32, %arg1: i32) -> (i32, i32) {
    %c0_i32 = arith.constant 0 : i32
    %c0_i32_0 = arith.constant 0 : i32
    %c0_i32_1 = arith.constant 0 : i32
    return %c0_i32, %c0_i32_0 : i32, i32
  }
  func.func @transform_3(%arg0: i32, %arg1: i32) -> (i32, i32) {
    %c0_i32 = arith.constant 0 : i32
    %c0_i32_0 = arith.constant 0 : i32
    %c0_i32_1 = arith.constant 0 : i32
    return %c0_i32, %c0_i32_0 : i32, i32
  }
  func.func @transform_4(%arg0: i32, %arg1: i32) -> (i32, i32) {
    %c0_i32 = arith.constant 0 : i32
    %c0_i32_0 = arith.constant 0 : i32
    %c0_i32_1 = arith.constant 0 : i32
    return %c0_i32, %c0_i32_0 : i32, i32
  }
  func.func @transform_5(%arg0: i32, %arg1: i32) -> (i32, i32, i32) {
    %c0_i32 = arith.constant 0 : i32
    %c0_i32_0 = arith.constant 0 : i32
    return %arg0, %arg1, %c0_i32 : i32, i32, i32
  }
  func.func @transform_6(%arg0: i32, %arg1: i32) -> (i32, i32, i32) {
    %c0_i32 = arith.constant 0 : i32
    %c0_i32_0 = arith.constant 0 : i32
    return %arg0, %arg1, %c0_i32 : i32, i32, i32
  }
}

</mosaic_0001>

<llo_original>
// kernel: tpu_custom_call.1
$region0: #{tpu_custom_call.1}
  #allocation0 [shape = 'u32[]', space=smem, size = 0x4, offset = 0x4, fixed_abs, tag = 'smem constant byte address 0x4 - core index']
  #allocation1 [shape = 'u32[144,128]{1,0:T(1,128)}', space=vmem, size = 0x12000, scoped, tag = 'internal scratch']
  #allocation2 [shape = 'f32[48,64]{1,0:T(8,128)}', space=vmem, size = 0x6000, scoped, tag = 'scratch operand']
  %s0 = inlined_call_operand.hbm [shape: f32[1,16,64], index: 0, kind: input, shape index: {}]
  %s1 = inlined_call_operand.hbm [shape: f32[25,64], index: 1, kind: input, shape index: {}]
  %s2 = inlined_call_operand.vmem [shape: f32[1,64], index: 2, kind: input, shape index: {}]
  %s3 = inlined_call_operand.vmem [shape: f32[1,64], index: 3, kind: input, shape index: {}]
  %s4 = inlined_call_operand.vmem [shape: f32[1,64], index: 4, kind: input, shape index: {}]
  %s5 = inlined_call_operand.hbm [shape: f32[1,16,64], index: 5, kind: output, shape index: {0}]
  %s6 = inlined_call_operand.hbm [shape: f32[1,16,64], index: 6, kind: output, shape index: {1}]
  %7 = xla_tuple %s5, %s6
  %s8 = sld [smem:[#allocation0]]
  $region46: #{tpu_custom_call.1} parent=0
    _
  %s10 = ssub.s32 1, %s8
  %s11 = scalar_select 0, %s10, %s8
  $region1: #{tpu_custom_call.1} parent=0
    #allocation3 [shape = 'u8[8192]{0}', space=vmem, size = 0x2000, scoped, tag = 'input window, operand 0, single buffered']
    #allocation4 [shape = 's32[1]{0}', space=sflag, size = 0x4, scoped, tag = 'scoped memory for tpu_custom_call.1']
    #allocation5 [shape = 's32[1]{0}', space=sflag, size = 0x4, scoped, tag = 'scoped memory for tpu_custom_call.1']
    #allocation6 [shape = 'u8[16384]{0}', space=vmem, size = 0x4000, scoped, tag = 'input window, operand 1, single buffered']
    #allocation7 [shape = 's32[1]{0}', space=sflag, size = 0x4, scoped, tag = 'scoped memory for tpu_custom_call.1']
    #allocation8 [shape = 'u8[8192]{0}', space=vmem, size = 0x2000, scoped, tag = 'output window, operand 0, single buffered']
    #allocation9 [shape = 'u8[8192]{0}', space=vmem, size = 0x2000, scoped, tag = 'output window, operand 1, single buffered']
    #allocation10 [shape = 's32[1]{0}', space=sflag, size = 0x4, scoped, tag = 'scoped memory for tpu_custom_call.1']
    %12 = vsyncpa [#allocation4], 0
    %13 = vsyncpa [#allocation7], 0
    %14 = vsyncpa [#allocation5], 0
    %15 = vsyncpa [#allocation10], 0
    // Predicated region
    $region2: #{tpu_custom_call.1} parent=1 // pred_check
      _
    $region3: #{tpu_custom_call.1} parent=1 // pred_check_branch
      %17 = sbr.rel (0) target = $region5
    $region4: #{tpu_custom_call.1} parent=1 // pred_region
      %s19 = ssub.s32 256, 256
      %20 = vsyncadd [#allocation4], %s19
      %s21 = sshll.u32 [#allocation3], 4
      %s22 = int_to_ptr.vmem [resolvable:$true] %s21
      %27 = dma.hbm_to_vmem [thread:$0]  %s0, 256, %s22, [#allocation4], 128, 128, 8
    $region5: #{tpu_custom_call.1} parent=1 // pred_fallthru
      _
    // Predicated region
    $region6: #{tpu_custom_call.1} parent=1 // pred_check
      _
    $region7: #{tpu_custom_call.1} parent=1 // pred_check_branch
      %29 = sbr.rel (0) target = $region9
    $region8: #{tpu_custom_call.1} parent=1 // pred_region
      %s31 = ssub.s32 512, 512
      %32 = vsyncadd [#allocation7], %s31
      %s33 = sshll.u32 [#allocation6], 4
      %s34 = int_to_ptr.vmem [resolvable:$true] %s33
      %39 = dma.hbm_to_vmem [thread:$0]  %s1, 512, %s34, [#allocation7], 128, 128, 8
    $region9: #{tpu_custom_call.1} parent=1 // pred_fallthru
      _
    // Predicated region
    $region10: #{tpu_custom_call.1} parent=1 // pred_check
      _
    $region11: #{tpu_custom_call.1} parent=1 // pred_check_branch
      %41 = sbr.rel (0) target = $region13
    $region12: #{tpu_custom_call.1} parent=1 // pred_region
      _
    $region13: #{tpu_custom_call.1} parent=1 // pred_fallthru
      _
    // Predicated region
    $region14: #{tpu_custom_call.1} parent=1 // pred_check
      _
    $region15: #{tpu_custom_call.1} parent=1 // pred_check_branch
      %43 = sbr.rel (0) target = $region17
    $region16: #{tpu_custom_call.1} parent=1 // pred_region
      _
    $region17: #{tpu_custom_call.1} parent=1 // pred_fallthru
      _
    // Predicated region
    $region18: #{tpu_custom_call.1} parent=1 // pred_check
      _
    $region19: #{tpu_custom_call.1} parent=1 // pred_check_branch
      %45 = sbr.rel (0) target = $region21
    $region20: #{tpu_custom_call.1} parent=1 // pred_region
      _
    $region21: #{tpu_custom_call.1} parent=1 // pred_fallthru
      _
    // Predicated region
    $region22: #{tpu_custom_call.1} parent=1 // pred_check
      _
    $region23: #{tpu_custom_call.1} parent=1 // pred_check_branch
      %47 = sbr.rel (0) target = $region25
    $region24: #{tpu_custom_call.1} parent=1 // pred_region
      %48 = dma.done [#allocation4], 256
    $region25: #{tpu_custom_call.1} parent=1 // pred_fallthru
      _
    // Predicated region
    $region26: #{tpu_custom_call.1} parent=1 // pred_check
      _
    $region27: #{tpu_custom_call.1} parent=1 // pred_check_branch
      %50 = sbr.rel (0) target = $region29
    $region28: #{tpu_custom_call.1} parent=1 // pred_region
      %51 = dma.done [#allocation7], 512
    $region29: #{tpu_custom_call.1} parent=1 // pred_fallthru
      _
    %v52 = vld [vmem:[#allocation3] sm:$0xff]
    %v53 = vld [vmem:[#allocation3 + $0x8] sm:$0xff]
    %vm54 = vcmask 523264
    %55 = vst.msk [vmem:[#allocation2 + $0x10] sm:$0xff] %vm54, %v52
    %56 = vst.msk [vmem:[#allocation2 + $0x18] sm:$0xff] %vm54, %v53
    %57 = vst.msk [vmem:[#allocation2] sm:$0xff] %vm54, 0.0
    %58 = vst.msk [vmem:[#allocation2 + $0x8] sm:$0xff] %vm54, 0.0
    %59 = vst.msk [vmem:[#allocation2 + $0x20] sm:$0xff] %vm54, 0.0
    %60 = vst.msk [vmem:[#allocation2 + $0x28] sm:$0xff] %vm54, 0.0
    %v61 = vld [vmem:[#allocation6] sm:$0xff]
    %v62 = vld [vmem:[#allocation6 + $0x8] sm:$0xff]
    %v63 = vld [vmem:[#allocation6 + $0x10] sm:$0xff]
    %v64 = vld [vmem:[#allocation6 + $0x18] sm:$0x1]
    %v65 = vld [vmem:[#allocation2 + $0x4] sm:$0xff]
    %v66 = vld [vmem:[#allocation2 + $0xc] sm:$0xff]
    %v67 = vlaneseq
    %v68 = vshrl.u32 %v67, 7
    %v69 = vsub.s32 0, %v68
    %v70 = vrot.slane %v61, %v69
    %v71 = vmul.f32 %v65, %v70
    %v72 = vmul.f32 %v66, %v70
    %v73 = vld [vmem:[#allocation2 + $0x5] sm:$0xff]
    %v74 = vld [vmem:[#allocation2 + $0xd] sm:$0xff]
    %v75 = vlaneseq
    %v76 = vshrl.u32 %v75, 7
    %v77 = vsub.s32 1, %v76
    %v78 = vrot.slane %v61, %v77
    %v79 = vmul.f32 %v73, %v78
    %v80 = vmul.f32 %v74, %v78
    %v81 = vadd.f32 %v71, %v79
    %v82 = vadd.f32 %v72, %v80
    %v83 = vld [vmem:[#allocation2 + $0x6] sm:$0xff]
    %v84 = vld [vmem:[#allocation2 + $0xe] sm:$0xff]
    %v85 = vlaneseq
    %v86 = vshrl.u32 %v85, 7
    %v87 = vsub.s32 2, %v86
    %v88 = vrot.slane %v61, %v87
    %v89 = vmul.f32 %v83, %v88
    %v90 = vmul.f32 %v84, %v88
    %v91 = vadd.f32 %v81, %v89
    %v92 = vadd.f32 %v82, %v90
    %v93 = vld [vmem:[#allocation2 + $0x7] sm:$0xff]
    %v94 = vld [vmem:[#allocation2 + $0xf] sm:$0xff]
    %v95 = vlaneseq
    %v96 = vshrl.u32 %v95, 7
    %v97 = vsub.s32 3, %v96
    %v98 = vrot.slane %v61, %v97
    %v99 = vmul.f32 %v93, %v98
    %v100 = vmul.f32 %v94, %v98
    %v101 = vadd.f32 %v91, %v99
    %v102 = vadd.f32 %v92, %v100
    %v103 = vld [vmem:[#allocation2 + $0x8] sm:$0xff]
    %v104 = vld [vmem:[#allocation2 + $0x10] sm:$0xff]
    %v105 = vlaneseq
    %v106 = vshrl.u32 %v105, 7
    %v107 = vsub.s32 4, %v106
    %v108 = vrot.slane %v61, %v107
    %v109 = vmul.f32 %v103, %v108
    %v110 = vmul.f32 %v104, %v108
    %v111 = vadd.f32 %v101, %v109
    %v112 = vadd.f32 %v102, %v110
    %v113 = vld [vmem:[#allocation2 + $0x9] sm:$0xff]
    %v114 = vld [vmem:[#allocation2 + $0x11] sm:$0xff]
    %v115 = vlaneseq
    %v116 = vshrl.u32 %v115, 7
    %v117 = vsub.s32 5, %v116
    %v118 = vrot.slane %v61, %v117
    %v119 = vmul.f32 %v113, %v118
    %v120 = vmul.f32 %v114, %v118
    %v121 = vadd.f32 %v111, %v119
    %v122 = vadd.f32 %v112, %v120
    %v123 = vld [vmem:[#allocation2 + $0xa] sm:$0xff]
    %v124 = vld [vmem:[#allocation2 + $0x12] sm:$0xff]
    %v125 = vlaneseq
    %v126 = vshrl.u32 %v125, 7
    %v127 = vsub.s32 6, %v126
    %v128 = vrot.slane %v61, %v127
    %v129 = vmul.f32 %v123, %v128
    %v130 = vmul.f32 %v124, %v128
    %v131 = vadd.f32 %v121, %v129
    %v132 = vadd.f32 %v122, %v130
    %v133 = vld [vmem:[#allocation2 + $0xb] sm:$0xff]
    %v134 = vld [vmem:[#allocation2 + $0x13] sm:$0xff]
    %v135 = vlaneseq
    %v136 = vshrl.u32 %v135, 7
    %v137 = vsub.s32 7, %v136
    %v138 = vrot.slane %v61, %v137
    %v139 = vmul.f32 %v133, %v138
    %v140 = vmul.f32 %v134, %v138
    %v141 = vadd.f32 %v131, %v139
    %v142 = vadd.f32 %v132, %v140
    %v143 = vld [vmem:[#allocation2 + $0x14] sm:$0xff]
    %v144 = vlaneseq
    %v145 = vshrl.u32 %v144, 7
    %v146 = vsub.s32 0, %v145
    %v147 = vrot.slane %v62, %v146
    %v148 = vmul.f32 %v66, %v147
    %v149 = vmul.f32 %v143, %v147
    %v150 = vadd.f32 %v141, %v148
    %v151 = vadd.f32 %v142, %v149
    %v152 = vld [vmem:[#allocation2 + $0x15] sm:$0xff]
    %v153 = vlaneseq
    %v154 = vshrl.u32 %v153, 7
    %v155 = vsub.s32 1, %v154
    %v156 = vrot.slane %v62, %v155
    %v157 = vmul.f32 %v74, %v156
    %v158 = vmul.f32 %v152, %v156
    %v159 = vadd.f32 %v150, %v157
    %v160 = vadd.f32 %v151, %v158
    %v161 = vld [vmem:[#allocation2 + $0x16] sm:$0xff]
    %v162 = vlaneseq
    %v163 = vshrl.u32 %v162, 7
    %v164 = vsub.s32 2, %v163
    %v165 = vrot.slane %v62, %v164
    %v166 = vmul.f32 %v84, %v165
    %v167 = vmul.f32 %v161, %v165
    %v168 = vadd.f32 %v159, %v166
    %v169 = vadd.f32 %v160, %v167
    %v170 = vld [vmem:[#allocation2 + $0x17] sm:$0xff]
    %v171 = vlaneseq
    %v172 = vshrl.u32 %v171, 7
    %v173 = vsub.s32 3, %v172
    %v174 = vrot.slane %v62, %v173
    %v175 = vmul.f32 %v94, %v174
    %v176 = vmul.f32 %v170, %v174
    %v177 = vadd.f32 %v168, %v175
    %v178 = vadd.f32 %v169, %v176
    %v179 = vld [vmem:[#allocation2 + $0x18] sm:$0xff]
    %v180 = vlaneseq
    %v181 = vshrl.u32 %v180, 7
    %v182 = vsub.s32 4, %v181
    %v183 = vrot.slane %v62, %v182
    %v184 = vmul.f32 %v104, %v183
    %v185 = vmul.f32 %v179, %v183
    %v186 = vadd.f32 %v177, %v184
    %v187 = vadd.f32 %v178, %v185
    %v188 = vld [vmem:[#allocation2 + $0x19] sm:$0xff]
    %v189 = vlaneseq
    %v190 = vshrl.u32 %v189, 7
    %v191 = vsub.s32 5, %v190
    %v192 = vrot.slane %v62, %v191
    %v193 = vmul.f32 %v114, %v192
    %v194 = vmul.f32 %v188, %v192
    %v195 = vadd.f32 %v186, %v193
    %v196 = vadd.f32 %v187, %v194
    %v197 = vld [vmem:[#allocation2 + $0x1a] sm:$0xff]
    %v198 = vlaneseq
    %v199 = vshrl.u32 %v198, 7
    %v200 = vsub.s32 6, %v199
    %v201 = vrot.slane %v62, %v200
    %v202 = vmul.f32 %v124, %v201
    %v203 = vmul.f32 %v197, %v201
    %v204 = vadd.f32 %v195, %v202
    %v205 = vadd.f32 %v196, %v203
    %v206 = vld [vmem:[#allocation2 + $0x1b] sm:$0xff]
    %v207 = vlaneseq
    %v208 = vshrl.u32 %v207, 7
    %v209 = vsub.s32 7, %v208
    %v210 = vrot.slane %v62, %v209
    %v211 = vmul.f32 %v134, %v210
    %v212 = vmul.f32 %v206, %v210
    %v213 = vadd.f32 %v204, %v211
    %v214 = vadd.f32 %v205, %v212
    %v215 = vld [vmem:[#allocation2 + $0x1c] sm:$0xff]
    %v216 = vlaneseq
    %v217 = vshrl.u32 %v216, 7
    %v218 = vsub.s32 0, %v217
    %v219 = vrot.slane %v63, %v218
    %v220 = vmul.f32 %v143, %v219
    %v221 = vmul.f32 %v215, %v219
    %v222 = vadd.f32 %v213, %v220
    %v223 = vadd.f32 %v214, %v221
    %v224 = vld [vmem:[#allocation2 + $0x1d] sm:$0xff]
    %v225 = vlaneseq
    %v226 = vshrl.u32 %v225, 7
    %v227 = vsub.s32 1, %v226
    %v228 = vrot.slane %v63, %v227
    %v229 = vmul.f32 %v152, %v228
    %v230 = vmul.f32 %v224, %v228
    %v231 = vadd.f32 %v222, %v229
    %v232 = vadd.f32 %v223, %v230
    %v233 = vld [vmem:[#allocation2 + $0x1e] sm:$0xff]
    %v234 = vlaneseq
    %v235 = vshrl.u32 %v234, 7
    %v236 = vsub.s32 2, %v235
    %v237 = vrot.slane %v63, %v236
    %v238 = vmul.f32 %v161, %v237
    %v239 = vmul.f32 %v233, %v237
    %v240 = vadd.f32 %v231, %v238
    %v241 = vadd.f32 %v232, %v239
    %v242 = vld [vmem:[#allocation2 + $0x1f] sm:$0xff]
    %v243 = vlaneseq
    %v244 = vshrl.u32 %v243, 7
    %v245 = vsub.s32 3, %v244
    %v246 = vrot.slane %v63, %v245
    %v247 = vmul.f32 %v170, %v246
    %v248 = vmul.f32 %v242, %v246
    %v249 = vadd.f32 %v240, %v247
    %v250 = vadd.f32 %v241, %v248
    %v251 = vld [vmem:[#allocation2 + $0x20] sm:$0xff]
    %v252 = vlaneseq
    %v253 = vshrl.u32 %v252, 7
    %v254 = vsub.s32 4, %v253
    %v255 = vrot.slane %v63, %v254
    %v256 = vmul.f32 %v179, %v255
    %v257 = vmul.f32 %v251, %v255
    %v258 = vadd.f32 %v249, %v256
    %v259 = vadd.f32 %v250, %v257
    %v260 = vld [vmem:[#allocation2 + $0x21] sm:$0xff]
    %v261 = vlaneseq
    %v262 = vshrl.u32 %v261, 7
    %v263 = vsub.s32 5, %v262
    %v264 = vrot.slane %v63, %v263
    %v265 = vmul.f32 %v188, %v264
    %v266 = vmul.f32 %v260, %v264
    %v267 = vadd.f32 %v258, %v265
    %v268 = vadd.f32 %v259, %v266
    %v269 = vld [vmem:[#allocation2 + $0x22] sm:$0xff]
    %v270 = vlaneseq
    %v271 = vshrl.u32 %v270, 7
    %v272 = vsub.s32 6, %v271
    %v273 = vrot.slane %v63, %v272
    %v274 = vmul.f32 %v197, %v273
    %v275 = vmul.f32 %v269, %v273
    %v276 = vadd.f32 %v267, %v274
    %v277 = vadd.f32 %v268, %v275
    %v278 = vld [vmem:[#allocation2 + $0x23] sm:$0xff]
    %v279 = vlaneseq
    %v280 = vshrl.u32 %v279, 7
    %v281 = vsub.s32 7, %v280
    %v282 = vrot.slane %v63, %v281
    %v283 = vmul.f32 %v206, %v282
    %v284 = vmul.f32 %v278, %v282
    %v285 = vadd.f32 %v276, %v283
    %v286 = vadd.f32 %v277, %v284
    %v287 = vld [vmem:[#allocation2 + $0x24] sm:$0xff]
    %v288 = vlaneseq
    %v289 = vshrl.u32 %v288, 7
    %v290 = vsub.s32 0, %v289
    %v291 = vrot.slane %v64, %v290
    %v292 = vmul.f32 %v215, %v291
    %v293 = vmul.f32 %v287, %v291
    %v294 = vadd.f32 %v285, %v292
    %v295 = vadd.f32 %v286, %v293
    %v296 = vld [vmem:[%s2] sm:$0x1]
    %v298 = vlaneseq
    %v299 = vshrl.u32 %v298, 7
    %v300 = vsub.s32 0, %v299
    %v301 = vrot.slane %v296, %v300
    %v303 = vadd.f32 %v294, %v301
    %v304 = vadd.f32 %v295, %v301
    %305 = vst.msk [vmem:[#allocation8] sm:$0xff] %vm54, %v303
    %306 = vst.msk [vmem:[#allocation8 + $0x8] sm:$0xff] %vm54, %v304
    %v307 = vld [vmem:[#allocation2 + $0x10] sm:$0xff]
    %v308 = vld [vmem:[#allocation2 + $0x18] sm:$0xff]
    %v309 = vsub.f32 %v307, %v303
    %v310 = vsub.f32 %v308, %v304
    %v311 = vld [vmem:[%s3] sm:$0x1]
    %v312 = vld [vmem:[%s4] sm:$0x1]
    %vm313 = vcmask 261120
    %v314 = vsel %vm313, %v309, 0.0
    %315 = vadd.xlane.f32.xlu0 %v314
    %v316 = vpop.xlane.xlu0 %315
    %v317 = vsel %vm313, %v310, 0.0
    %318 = vadd.xlane.f32.xlu0 %v317
    %v319 = vpop.xlane.xlu0 %318
    %v320 = vrcp.pop 32.0
    %v321 = vmul.f32 %v316, %v320
    %v322 = vmul.f32 %v319, %v320
    %v323 = vmul.f32 %v309, %v309
    %v324 = vmul.f32 %v310, %v310
    %v325 = vsel %vm313, %v323, 0.0
    %326 = vadd.xlane.f32.xlu0 %v325
    %v327 = vpop.xlane.xlu0 %326
    %v328 = vsel %vm313, %v324, 0.0
    %329 = vadd.xlane.f32.xlu0 %v328
    %v330 = vpop.xlane.xlu0 %329
    %v331 = vmul.f32 %v327, %v320
    %v332 = vmul.f32 %v330, %v320
    %v333 = vmul.f32 %v321, %v321
    %v334 = vmul.f32 %v322, %v322
    %v335 = vsub.f32 %v331, %v333
    %v336 = vsub.f32 %v332, %v334
    %v337 = vmax.f32 %v335, 0.0
    %v338 = vmax.f32 %v336, 0.0
    %v339 = vadd.f32 %v337, 1e-05
    %v340 = vadd.f32 %v338, 1e-05
    %v341 = vrsqrt.pop %v339
    %v342 = vrsqrt.pop %v340
    %v343 = vsub.f32 %v309, %v321
    %v344 = vsub.f32 %v310, %v322
    %v345 = vmul.f32 %v343, %v341
    %v346 = vmul.f32 %v344, %v342
    %v348 = vlaneseq
    %v349 = vshrl.u32 %v348, 7
    %v350 = vsub.s32 0, %v349
    %v351 = vrot.slane %v311, %v350
    %v353 = vmul.f32 %v345, %v351
    %v354 = vmul.f32 %v346, %v351
    %v356 = vlaneseq
    %v357 = vshrl.u32 %v356, 7
    %v358 = vsub.s32 0, %v357
    %v359 = vrot.slane %v312, %v358
    %v361 = vadd.f32 %v353, %v359
    %v362 = vadd.f32 %v354, %v359
    %363 = vst.msk [vmem:[#allocation9] sm:$0xff] %vm313, %v361
    %364 = vst.msk [vmem:[#allocation9 + $0x8] sm:$0xff] %vm313, %v362
    %367 = vrot.lane.b32.xlu0 %v309, 96
    %v368 = vpop.permute.xlu0 %367
    %369 = vrot.lane.b32.xlu0 %v310, 96
    %v370 = vpop.permute.xlu0 %369
    %v373 = vsel %vm313, %v368, 0.0
    %374 = vadd.xlane.f32.xlu0 %v373
    %v375 = vpop.xlane.xlu0 %374
    %v376 = vsel %vm313, %v370, 0.0
    %377 = vadd.xlane.f32.xlu0 %v376
    %v378 = vpop.xlane.xlu0 %377
    %v379 = vmul.f32 %v375, %v320
    %v380 = vmul.f32 %v378, %v320
    %383 = vrot.lane.b32.xlu0 %v323, 96
    %v384 = vpop.permute.xlu0 %383
    %385 = vrot.lane.b32.xlu0 %v324, 96
    %v386 = vpop.permute.xlu0 %385
    %v389 = vsel %vm313, %v384, 0.0
    %390 = vadd.xlane.f32.xlu0 %v389
    %v391 = vpop.xlane.xlu0 %390
    %v392 = vsel %vm313, %v386, 0.0
    %393 = vadd.xlane.f32.xlu0 %v392
    %v394 = vpop.xlane.xlu0 %393
    %v395 = vmul.f32 %v391, %v320
    %v396 = vmul.f32 %v394, %v320
    %v397 = vmul.f32 %v379, %v379
    %v398 = vmul.f32 %v380, %v380
    %v399 = vsub.f32 %v395, %v397
    %v400 = vsub.f32 %v396, %v398
    %v401 = vmax.f32 %v399, 0.0
    %v402 = vmax.f32 %v400, 0.0
    %v403 = vadd.f32 %v401, 1e-05
    %v404 = vadd.f32 %v402, 1e-05
    %v405 = vrsqrt.pop %v403
    %v406 = vrsqrt.pop %v404
    %v407 = vsub.f32 %v309, %v379
    %v408 = vsub.f32 %v310, %v380
    %v409 = vmul.f32 %v407, %v405
    %v410 = vmul.f32 %v408, %v406
    %v411 = vmul.f32 %v409, %v351
    %v412 = vmul.f32 %v410, %v351
    %v413 = vadd.f32 %v411, %v359
    %v414 = vadd.f32 %v412, %v359
    %vm415 = vcmask 523520
    %416 = vst.msk [vmem:[#allocation9] sm:$0xff] %vm415, %v413
    %417 = vst.msk [vmem:[#allocation9 + $0x8] sm:$0xff] %vm415, %v414
    // Predicated region
    $region30: #{tpu_custom_call.1} parent=1 // pred_check
      _
    $region31: #{tpu_custom_call.1} parent=1 // pred_check_branch
      %419 = sbr.rel (0) target = $region33
    $region32: #{tpu_custom_call.1} parent=1 // pred_region
      %s421 = ssub.s32 256, 256
      %422 = vsyncadd [#allocation5], %s421
      %s423 = sshll.u32 [#allocation8], 4
      %s424 = int_to_ptr.vmem [resolvable:$true] %s423
      %429 = dma.vmem_to_hbm [thread:$0]  %s424, 256, %s5, [#allocation5], 128, 128, 8
    $region33: #{tpu_custom_call.1} parent=1 // pred_fallthru
      _
    // Predicated region
    $region34: #{tpu_custom_call.1} parent=1 // pred_check
      _
    $region35: #{tpu_custom_call.1} parent=1 // pred_check_branch
      %431 = sbr.rel (0) target = $region37
    $region36: #{tpu_custom_call.1} parent=1 // pred_region
      %s433 = ssub.s32 256, 256
      %434 = vsyncadd [#allocation10], %s433
      %s435 = sshll.u32 [#allocation9], 4
      %s436 = int_to_ptr.vmem [resolvable:$true] %s435
      %441 = dma.vmem_to_hbm [thread:$0]  %s436, 256, %s6, [#allocation10], 128, 128, 8
    $region37: #{tpu_custom_call.1} parent=1 // pred_fallthru
      _
    // Predicated region
    $region38: #{tpu_custom_call.1} parent=1 // pred_check
      _
    $region39: #{tpu_custom_call.1} parent=1 // pred_check_branch
      %443 = sbr.rel (0) target = $region41
    $region40: #{tpu_custom_call.1} parent=1 // pred_region
      %444 = dma.done [#allocation5], 256
    $region41: #{tpu_custom_call.1} parent=1 // pred_fallthru
      _
    // Predicated region
    $region42: #{tpu_custom_call.1} parent=1 // pred_check
      _
    $region43: #{tpu_custom_call.1} parent=1 // pred_check_branch
      %446 = sbr.rel (0) target = $region45
    $region44: #{tpu_custom_call.1} parent=1 // pred_region
      %447 = dma.done [#allocation10], 256
    $region45: #{tpu_custom_call.1} parent=1 // pred_fallthru
      _
    %448 = vsyncpa [#allocation4], 1
    %449 = vsyncpa [#allocation7], 1
    %450 = vsyncpa [#allocation5], 1
    %451 = vsyncpa [#allocation10], 1

</llo_original>
